<compile_context>
chip_gen: v7x
topology: tpu7x:2x2x1
jax: 0.10.0
libtpu: 0.0.40
codegen_flags: <defaults>
</compile_context>

<pallas_src>
import jax
import jax.numpy as jnp
from jax.experimental import pallas as pl
from jax.experimental.pallas import tpu as pltpu


def _copy_kernel(x_ref, o_ref):
    # Identity copy — the only "compute" in UnFlatten's forward.
    o_ref[...] = x_ref[...]


def _pick_layout(n):
    """Factor n elements into (rows, lanes) with lanes a large multiple of 128
    and (preferably) rows a multiple of 8, for lane-dense / sublane-full tiles."""
    candidates = (4096, 2048, 1024, 512, 256, 128)
    for lanes in candidates:                      # prefer sublane-full rows
        if n % lanes == 0 and (n // lanes) % 8 == 0:
            return n // lanes, lanes
    for lanes in candidates:                      # fall back: lane-aligned only
        if n % lanes == 0:
            return n // lanes, lanes
    return None


def _pallas_identity_copy(flat):
    """Tiled, pipelined, in-place-aliased identity copy of a 1-D buffer."""
    (n,) = flat.shape
    layout = _pick_layout(n)
    if layout is None:
        # Not 128-lane alignable; a copy kernel buys nothing for a pure view.
        return flat
    rows, lanes = layout

    # Row tile: power-of-two multiple of 8 that divides `rows`, capped so a
    # single tile is <= ~2 MiB (=> in+out, double-buffered, <= 8 MiB VMEM,
    # safe even under v7x's 32 MiB default scoped limit).
    itemsize = flat.dtype.itemsize
    max_rows_by_vmem = max(8, (2 * 1024 * 1024) // (lanes * itemsize))
    block_rows = None
    r = 8
    while r <= min(rows, max_rows_by_vmem):
        if rows % r == 0:
            block_rows = r
        r *= 2
    if block_rows is None:
        block_rows = rows  # full-extent block along rows (always legal)

    x2d = jnp.reshape(flat, (rows, lanes))
    copied = pl.pallas_call(
        _copy_kernel,
        out_shape=jax.ShapeDtypeStruct((rows, lanes), x2d.dtype),
        grid=(rows // block_rows,),
        in_specs=[pl.BlockSpec((block_rows, lanes), lambda i: (i, 0))],
        out_specs=pl.BlockSpec((block_rows, lanes), lambda i: (i, 0)),
        # Alias in->out: the "copy" is in place; XLA may elide the HBM pass.
        input_output_aliases={0: 0},
        compiler_params=pltpu.CompilerParams(
            dimension_semantics=("parallel",),      # shards across v7x's 2 TCs
            vmem_limit_bytes=32 * 1024 * 1024,      # explicit, v7x-safe budget
        ),
    )(x2d)
    return jnp.reshape(copied, (n,))


def unflatten(x, channels: int, size: int, *, force_kernel: bool = False):
    """Pallas/JAX implementation of UnFlatten.forward.

    Args:
      x: array whose trailing dims flatten to channels*size*size (leading dim B).
      channels, size: target C and spatial size S.
      force_kernel: if True, route through the tiled Pallas identity-copy
        kernel (for when a kernel boundary is required). Default is the
        optimal metadata-only reshape — UnFlatten is a pure view.
    Returns:
      array of shape (B, channels, size, size), same dtype as x (NCHW order).
    """
    b = x.shape[0]
    n = channels * size * size
    out_shape = (b, channels, size, size)

    if not force_kernel:
        # Optimal path: .view() == free reshape. No HBM traffic, no launch.
        return jnp.reshape(x, out_shape)

    flat = jnp.reshape(x, (b * n,))
    copied = _pallas_identity_copy(flat)
    return jnp.reshape(copied, out_shape)


if __name__ == "__main__":
    # Small shapes consistent with the module: B=2, channels=4, size=16.
    B, C, S = 2, 4, 16
    key = jax.random.PRNGKey(0)
    x = jax.random.normal(key, (B, C * S * S), dtype=jnp.float32)

    # Reference semantics: x.view(B, C, S, S).
    ref = jnp.reshape(x, (B, C, S, S))

    y_fast = unflatten(x, channels=C, size=S)                      # view path
    y_kern = unflatten(x, channels=C, size=S, force_kernel=True)   # Pallas path
    jax.block_until_ready((y_fast, y_kern))

    for y in (y_fast, y_kern):
        assert y.shape == (B, C, S, S), y.shape
        assert y.dtype == x.dtype
        assert bool(jnp.array_equal(y, ref))

    print("KERNEL_OK")
</pallas_src>

<mosaic_0001>
module attributes {stable_mosaic.version = 11 : i64} {
  func.func @_copy_kernel(%arg0: i32, %arg1: memref<8x256xf32, #tpu.memory_space<vmem>>, %arg2: memref<8x256xf32, #tpu.memory_space<vmem>>) attributes {dimension_semantics = [#tpu.dimension_semantics<parallel>], iteration_bounds = array<i64: 1>, scalar_prefetch = 0 : i64, scratch_operands = 0 : i64, tpu.core_type = #tpu.core_type<tc>, window_params = [{transform_indices = @transform_0, window_bounds = array<i64: 8, 256>}, {transform_indices = @transform_1, window_bounds = array<i64: 8, 256>}]} {
    %c0 = arith.constant 0 : index
    %c0_0 = arith.constant 0 : index
    %0 = vector.load %arg1[%c0, %c0_0] : memref<8x256xf32, #tpu.memory_space<vmem>>, vector<8x256xf32>
    %c0_1 = arith.constant 0 : index
    %c0_2 = arith.constant 0 : index
    %1 = vector.load %arg2[%c0_1, %c0_2] : memref<8x256xf32, #tpu.memory_space<vmem>>, vector<8x256xf32>
    tpu.vector_store %arg2[%c0_1, %c0_2], %0 {strides = array<i32>} : memref<8x256xf32, #tpu.memory_space<vmem>>, vector<8x256xf32>,
    return
  }
  func.func @transform_0(%arg0: i32) -> (i32, i32) {
    %c0_i32 = arith.constant 0 : i32
    %c0_i32_0 = arith.constant 0 : i32
    return %arg0, %c0_i32 : i32, i32
  }
  func.func @transform_1(%arg0: i32) -> (i32, i32) {
    %c0_i32 = arith.constant 0 : i32
    %c0_i32_0 = arith.constant 0 : i32
    return %arg0, %c0_i32 : i32, i32
  }
}

</mosaic_0001>

<llo_original>
// kernel: tpu_custom_call.1
$region0: #{tpu_custom_call.1}
  #allocation0 [shape = 'u32[]', space=smem, size = 0x4, offset = 0x4, fixed_abs, tag = 'smem constant byte address 0x4 - core index']
  #allocation1 [shape = 'u32[144,128]{1,0:T(1,128)}', space=vmem, size = 0x12000, scoped, tag = 'internal scratch']
  %s0 = inlined_call_operand.hbm [shape: f32[8,256], index: 0, kind: input, shape index: {}, may-alias: {0,1}]
  %s1 = inlined_call_operand.hbm [shape: f32[8,256], index: 1, kind: output, shape index: {}, may-alias: {0,1}]
  %s2 = sld [smem:[#allocation0]]
  $region18: #{tpu_custom_call.1} parent=0
    _
  %s4 = ssub.s32 1, %s2
  %s5 = scalar_select 0, %s4, %s2
  $region1: #{tpu_custom_call.1} parent=0
    #allocation2 [shape = 'u8[8192]{0}', space=vmem, size = 0x2000, scoped, tag = 'input window, operand 0, single buffered']
    #allocation3 [shape = 's32[1]{0}', space=sflag, size = 0x4, scoped, tag = 'scoped memory for tpu_custom_call.1']
    #allocation4 [shape = 's32[1]{0}', space=sflag, size = 0x4, scoped, tag = 'scoped memory for tpu_custom_call.1']
    #allocation5 [shape = 'u8[8192]{0}', space=vmem, size = 0x2000, scoped, tag = 'output window, operand 0, single buffered']
    %6 = vsyncpa [#allocation3], 0
    %7 = vsyncpa [#allocation4], 0
    // Predicated region
    $region2: #{tpu_custom_call.1} parent=1 // pred_check
      _
    $region3: #{tpu_custom_call.1} parent=1 // pred_check_branch
      %9 = sbr.rel (0) target = $region5
    $region4: #{tpu_custom_call.1} parent=1 // pred_region
      %s11 = ssub.s32 256, 256
      %12 = vsyncadd [#allocation3], %s11
      %s14 = sshll.u32 [#allocation2], 4
      %s15 = int_to_ptr.vmem [resolvable:$true] %s14
      %17 = dma.hbm_to_vmem [thread:$0]  %s0, 256, %s15, [#allocation3]
    $region5: #{tpu_custom_call.1} parent=1 // pred_fallthru
      _
    // Predicated region
    $region6: #{tpu_custom_call.1} parent=1 // pred_check
      _
    $region7: #{tpu_custom_call.1} parent=1 // pred_check_branch
      %19 = sbr.rel (0) target = $region9
    $region8: #{tpu_custom_call.1} parent=1 // pred_region
      %20 = dma.done [#allocation3], 256
    $region9: #{tpu_custom_call.1} parent=1 // pred_fallthru
      _
    %v21 = vld [vmem:[#allocation2] sm:$0xff]
    %v22 = vld [vmem:[#allocation2 + $0x8] sm:$0xff]
    %23 = vst [vmem:[#allocation5] sm:$0xff] %v21
    %24 = vst [vmem:[#allocation5 + $0x8] sm:$0xff] %v22
    // Predicated region
    $region10: #{tpu_custom_call.1} parent=1 // pred_check
      _
    $region11: #{tpu_custom_call.1} parent=1 // pred_check_branch
      %26 = sbr.rel (0) target = $region13
    $region12: #{tpu_custom_call.1} parent=1 // pred_region
      %s28 = ssub.s32 256, 256
      %29 = vsyncadd [#allocation4], %s28
      %s31 = sshll.u32 [#allocation5], 4
      %s32 = int_to_ptr.vmem [resolvable:$true] %s31
      %34 = dma.vmem_to_hbm [thread:$0]  %s32, 256, %s1, [#allocation4]
    $region13: #{tpu_custom_call.1} parent=1 // pred_fallthru
      _
    // Predicated region
    $region14: #{tpu_custom_call.1} parent=1 // pred_check
      _
    $region15: #{tpu_custom_call.1} parent=1 // pred_check_branch
      %36 = sbr.rel (0) target = $region17
    $region16: #{tpu_custom_call.1} parent=1 // pred_region
      %37 = dma.done [#allocation4], 256
    $region17: #{tpu_custom_call.1} parent=1 // pred_fallthru
      _
    %38 = vsyncpa [#allocation3], 1
    %39 = vsyncpa [#allocation4], 1

</llo_original>
